<compile_context>
chip_gen: v5e
topology: v5e:2x2
jax: 0.10.0
libtpu: 0.0.40
codegen_flags: <defaults>
</compile_context>

<pallas_src>
import math

import jax
import jax.numpy as jnp
from jax.experimental import pallas as pl
from jax.experimental.pallas import tpu as pltpu


def _erf(z):
    # Abramowitz & Stegun 7.1.26 rational approximation of erf; max abs error
    # ~1.5e-7 in f32 -- negligible next to the bf16 MXU inputs.
    p = 0.3275911
    a1, a2, a3, a4, a5 = (0.254829592, -0.284496736, 1.421413741,
                          -1.453152027, 1.061405429)
    s = jnp.where(z >= 0.0, 1.0, -1.0)
    za = jnp.abs(z)
    # Divide runs on the (otherwise idle) EUP slot instead of the VALU.
    t = pl.reciprocal(1.0 + p * za, approx=True)
    poly = ((((a5 * t + a4) * t + a3) * t + a2) * t + a1) * t
    return s * (1.0 - poly * jnp.exp(-za * za))


def _gelu_exact(x):
    # PyTorch nn.GELU() default ("none") = exact erf GELU.
    return 0.5 * x * (1.0 + _erf(x * 0.7071067811865476))


def _prompt_mlp_kernel(x_ref, w1_ref, b1_ref, w2_ref, b2_ref, out_ref):
    # x tile (tr, C): bf16 on the MXU, f32 accumulate, f32 VPU elementwise.
    x = x_ref[...].astype(jnp.bfloat16)
    h = jnp.dot(x, w1_ref[...], preferred_element_type=jnp.float32)
    h = h + b1_ref[...]
    h = _gelu_exact(h)
    y = jnp.dot(h.astype(jnp.bfloat16), w2_ref[...],
                preferred_element_type=jnp.float32)
    y = y + b2_ref[...]
    out_ref[...] = y.astype(out_ref.dtype)


def init_params(key, d_model, output_dim):
    """PyTorch nn.Linear default init (uniform +/- 1/sqrt(fan_in)), f32."""
    hidden = d_model // 4
    k1, k2, k3, k4 = jax.random.split(key, 4)

    def w(k, din, dout):
        lim = 1.0 / math.sqrt(din)
        return jax.random.uniform(k, (din, dout), jnp.float32, -lim, lim)

    def b(k, din, dout):
        lim = 1.0 / math.sqrt(din)
        return jax.random.uniform(k, (dout,), jnp.float32, -lim, lim)

    return {"w1": w(k1, d_model, hidden), "b1": b(k2, d_model, hidden),
            "w2": w(k3, hidden, output_dim), "b2": b(k4, hidden, output_dim)}


def prepare_params(params):
    """One-time conversion to kernel-ready form (do this OUTSIDE the hot path):
    bf16 weights for the MXU, f32 row-vector biases, and output columns
    zero-padded to a multiple of 128 so the output slab stores lane-dense."""
    w1, b1, w2, b2 = params["w1"], params["b1"], params["w2"], params["b2"]
    H = w1.shape[1]
    O = w2.shape[1]
    Op = ((O + 127) // 128) * 128
    if Op != O:
        w2 = jnp.pad(w2, ((0, 0), (0, Op - O)))
        b2 = jnp.pad(b2, ((0, Op - O),))
    return {
        "w1": w1.astype(jnp.bfloat16),
        "b1": b1.astype(jnp.float32).reshape(1, H),
        "w2": w2.astype(jnp.bfloat16),
        "b2": b2.astype(jnp.float32).reshape(1, Op),
        "output_dim": O,
    }


def _vmem_capacity_bytes():
    try:
        return int(pltpu.get_tpu_info().vmem_capacity_bytes)
    except Exception:
        return 64 * 1024 * 1024   # conservative fallback: 64-MiB (v7x-class) part


def _round_up(v, m):
    return ((v + m - 1) // m) * m


def prompt_generation(x, params, *, block_rows=None, out_dtype=None):
    """Applies the PromptGeneration MLP along the last axis of x.

    `params` must come from prepare_params() (bf16 weights, padded out columns).
    `out_dtype` may be jnp.bfloat16 if the consumer accepts it (halves store bytes).
    """
    orig_shape = x.shape
    C = orig_shape[-1]
    w1, b1, w2, b2 = params["w1"], params["b1"], params["w2"], params["b2"]
    H = w1.shape[1]            # d_model // 4
    Op = w2.shape[1]           # output_dim padded to a multiple of 128
    O = int(params["output_dim"])
    out_dtype = x.dtype if out_dtype is None else out_dtype

    x2 = x.reshape(-1, C)
    R = x2.shape[0]
    x_bytes = x2.dtype.itemsize
    o_bytes = jnp.dtype(out_dtype).itemsize

    # ---- per-generation VMEM budget & row-tile sizing ----------------------
    vmem_cap = _vmem_capacity_bytes()
    vmem_limit = min((vmem_cap * 3) // 4, 100 * 1024 * 1024)  # 96 MiB v5e/v6e, 48 MiB v7x
    if block_rows is None:
        block_rows = 512 if vmem_cap >= 128 * 1024 * 1024 else 256

    tr = max(8, _round_up(min(block_rows, R), 8))
    if R > 8:                  # >= 2 parallel grid steps -> both v7x TCs get work
        tr = min(tr, _round_up(pl.cdiv(R, 2), 8))
    if tr >= 128:              # keep 128-row multiples so the v5e MXU tiles cleanly
        tr = (tr // 128) * 128

    # Explicit VMEM arithmetic: resident weights + double-buffered activation
    # tiles + f32/bf16 copies of the hidden tile; shrink the tile until it fits.
    weight_bytes = 2 * (C * H + H * Op) + 4 * (H + Op)
    def _tile_bytes(t):
        return (2 * t * C * x_bytes        # input tile, double-buffered
                + 2 * t * Op * o_bytes     # output tile, double-buffered
                + t * C * 2                # bf16 copy of x for the MXU
                + t * H * 6)               # hidden tile: f32 + bf16 copy
    budget = vmem_limit - 2 * weight_bytes - (2 << 20)
    while tr > 8 and _tile_bytes(tr) > budget:
        tr = max(8, _round_up(tr // 2, 8))
    # NOTE: if the weights alone approach the VMEM budget (d_model >= ~8k on v7x),
    # a second grid axis tiling the output columns of w2/out would be needed.

    grid = (pl.cdiv(R, tr),)   # ragged last tile: Pallas masks the store, no jnp.pad

    cost = pl.CostEstimate(
        flops=2 * R * (C * H + H * Op),
        transcendentals=R * H,                       # one exp per hidden activation
        bytes_accessed=R * C * x_bytes + R * Op * o_bytes + weight_bytes,
    )

    def _build(weight_spec):
        return pl.pallas_call(
            _prompt_mlp_kernel,
            out_shape=jax.ShapeDtypeStruct((R, Op), out_dtype),
            grid=grid,
            in_specs=[
                pl.BlockSpec((tr, C), lambda i: (i, 0)),
                weight_spec((C, H)),     # grid-invariant: constant block index
                weight_spec((1, H)),
                weight_spec((H, Op)),
                weight_spec((1, Op)),
            ],
            out_specs=pl.BlockSpec((tr, Op), lambda i: (i, 0)),
            compiler_params=pltpu.CompilerParams(
                dimension_semantics=("parallel",),   # row tiles are independent
                vmem_limit_bytes=vmem_limit,
            ),
            cost_estimate=cost,
        )

    try:
        # Single-buffer the grid-invariant weights/biases (halves their resident
        # footprint -- matters on v7x's 64 MiB VMEM).
        fn = _build(lambda s: pl.BlockSpec(s, lambda i: (0, 0),
                                           pipeline_mode=pl.Buffered(1)))
        out = fn(x2, w1, b1, w2, b2)
    except Exception:
        # Fallback: default buffering if this Pallas build rejects Buffered(1).
        fn = _build(lambda s: pl.BlockSpec(s, lambda i: (0, 0)))
        out = fn(x2, w1, b1, w2, b2)

    if Op != O:
        out = out[:, :O]
    return out.reshape(orig_shape[:-1] + (O,))


if __name__ == "__main__":
    d_model, output_dim = 64, 32
    B, N = 2, 8
    key = jax.random.PRNGKey(0)
    kx, kp = jax.random.split(key)
    x = jax.random.normal(kx, (B, N, d_model), jnp.float32)

    raw = init_params(kp, d_model, output_dim)   # PyTorch-equivalent f32 params
    params = prepare_params(raw)                 # one-time: bf16 weights, padded cols

    out = prompt_generation(x, params)           # auto-tiles to 8 rows x 2 grid steps
    jax.block_until_ready(out)
    assert out.shape == (B, N, output_dim), out.shape

    # Pure-JAX f32 reference (exact erf GELU); loose tolerance for bf16 MXU inputs.
    h = x @ raw["w1"] + raw["b1"]
    h = 0.5 * h * (1.0 + jax.scipy.special.erf(h / jnp.sqrt(2.0)))
    ref = h @ raw["w2"] + raw["b2"]
    assert bool(jnp.all(jnp.isfinite(out)))
    assert bool(jnp.allclose(out, ref, atol=5e-2, rtol=5e-2)), \
        float(jnp.max(jnp.abs(out - ref)))
    print("KERNEL_OK")
</pallas_src>

<mosaic_0001>
module attributes {stable_mosaic.version = 11 : i64} {
  func.func @_prompt_mlp_kernel(%arg0: i32, %arg1: memref<8x64xf32, #tpu.memory_space<vmem>>, %arg2: memref<64x16xbf16, #tpu.memory_space<vmem>>, %arg3: memref<1x16xf32, #tpu.memory_space<vmem>>, %arg4: memref<16x128xbf16, #tpu.memory_space<vmem>>, %arg5: memref<1x128xf32, #tpu.memory_space<vmem>>, %arg6: memref<8x128xf32, #tpu.memory_space<vmem>>) attributes {dimension_semantics = [#tpu.dimension_semantics<parallel>], iteration_bounds = array<i64: 2>, scalar_prefetch = 0 : i64, scratch_operands = 0 : i64, tpu.core_type = #tpu.core_type<tc>, window_params = [{transform_indices = @transform_0, window_bounds = array<i64: 8, 64>}, {pipeline_mode = #tpu.pipeline_mode<synchronous>, transform_indices = @transform_1, window_bounds = array<i64: 64, 16>}, {pipeline_mode = #tpu.pipeline_mode<synchronous>, transform_indices = @transform_2, window_bounds = array<i64: 1, 16>}, {pipeline_mode = #tpu.pipeline_mode<synchronous>, transform_indices = @transform_3, window_bounds = array<i64: 16, 128>}, {pipeline_mode = #tpu.pipeline_mode<synchronous>, transform_indices = @transform_4, window_bounds = array<i64: 1, 128>}, {transform_indices = @transform_5, window_bounds = array<i64: 8, 128>}]} {
    %c0 = arith.constant 0 : index
    %c0_0 = arith.constant 0 : index
    %0 = vector.load %arg1[%c0, %c0_0] : memref<8x64xf32, #tpu.memory_space<vmem>>, vector<8x64xf32>
    %1 = arith.truncf %0 : vector<8x64xf32> to vector<8x64xbf16>
    %c0_1 = arith.constant 0 : index
    %c0_2 = arith.constant 0 : index
    %2 = vector.load %arg2[%c0_1, %c0_2] : memref<64x16xbf16, #tpu.memory_space<vmem>>, vector<64x16xbf16>
    %cst = arith.constant dense<0.000000e+00> : vector<8x16xf32>
    %3 = tpu.matmul %1, %2, %cst {dimension_numbers = #tpu.dot_dimension_numbers<[1], [0], [0], [1], [0, 0, 1, 1], [], []>} : vector<8x64xbf16>, vector<64x16xbf16>, vector<8x16xf32> -> vector<8x16xf32>
    %c0_3 = arith.constant 0 : index
    %c0_4 = arith.constant 0 : index
    %4 = vector.load %arg3[%c0_3, %c0_4] : memref<1x16xf32, #tpu.memory_space<vmem>>, vector<1x16xf32>
    %5 = vector.broadcast %4 : vector<1x16xf32> to vector<8x16xf32>
    %6 = arith.addf %3, %5 : vector<8x16xf32>
    %cst_5 = arith.constant 5.000000e-01 : f32
    %7 = vector.broadcast %cst_5 : f32 to vector<8x16xf32>
    %8 = arith.mulf %7, %6 : vector<8x16xf32>
    %cst_6 = arith.constant 0.707106769 : f32
    %9 = vector.broadcast %cst_6 : f32 to vector<8x16xf32>
    %10 = arith.mulf %6, %9 : vector<8x16xf32>
    %cst_7 = arith.constant 0.000000e+00 : f32
    %11 = vector.broadcast %cst_7 : f32 to vector<8x16xf32>
    %12 = arith.cmpf oge, %10, %11 : vector<8x16xf32>
    %cst_8 = arith.constant 1.000000e+00 : f32
    %cst_9 = arith.constant -1.000000e+00 : f32
    %13 = vector.broadcast %cst_8 : f32 to vector<8x16xf32>
    %14 = vector.broadcast %cst_9 : f32 to vector<8x16xf32>
    %15 = arith.select %12, %13, %14 : vector<8x16xi1>, vector<8x16xf32>
    %16 = math.absf %10 : vector<8x16xf32>
    %cst_10 = arith.constant 0.327591091 : f32
    %17 = vector.broadcast %cst_10 : f32 to vector<8x16xf32>
    %18 = arith.mulf %17, %16 : vector<8x16xf32>
    %cst_11 = arith.constant 1.000000e+00 : f32
    %19 = vector.broadcast %cst_11 : f32 to vector<8x16xf32>
    %20 = arith.addf %19, %18 : vector<8x16xf32>
    %21 = tpu.reciprocal %20 {approx = true} : vector<8x16xf32> -> vector<8x16xf32>
    %cst_12 = arith.constant 1.06140542 : f32
    %22 = vector.broadcast %cst_12 : f32 to vector<8x16xf32>
    %23 = arith.mulf %22, %21 : vector<8x16xf32>
    %cst_13 = arith.constant -1.45315206 : f32
    %24 = vector.broadcast %cst_13 : f32 to vector<8x16xf32>
    %25 = arith.addf %23, %24 : vector<8x16xf32>
    %26 = arith.mulf %25, %21 : vector<8x16xf32>
    %cst_14 = arith.constant 1.42141378 : f32
    %27 = vector.broadcast %cst_14 : f32 to vector<8x16xf32>
    %28 = arith.addf %26, %27 : vector<8x16xf32>
    %29 = arith.mulf %28, %21 : vector<8x16xf32>
    %cst_15 = arith.constant -0.284496725 : f32
    %30 = vector.broadcast %cst_15 : f32 to vector<8x16xf32>
    %31 = arith.addf %29, %30 : vector<8x16xf32>
    %32 = arith.mulf %31, %21 : vector<8x16xf32>
    %cst_16 = arith.constant 0.254829586 : f32
    %33 = vector.broadcast %cst_16 : f32 to vector<8x16xf32>
    %34 = arith.addf %32, %33 : vector<8x16xf32>
    %35 = arith.mulf %34, %21 : vector<8x16xf32>
    %cst_17 = arith.constant 0.000000e+00 : f32
    %36 = vector.broadcast %cst_17 : f32 to vector<8x16xf32>
    %37 = arith.subf %36, %16 : vector<8x16xf32>
    %38 = arith.mulf %37, %16 : vector<8x16xf32>
    %39 = math.exp %38 : vector<8x16xf32>
    %40 = arith.mulf %35, %39 : vector<8x16xf32>
    %cst_18 = arith.constant 1.000000e+00 : f32
    %41 = vector.broadcast %cst_18 : f32 to vector<8x16xf32>
    %42 = arith.subf %41, %40 : vector<8x16xf32>
    %43 = arith.mulf %15, %42 : vector<8x16xf32>
    %cst_19 = arith.constant 1.000000e+00 : f32
    %44 = vector.broadcast %cst_19 : f32 to vector<8x16xf32>
    %45 = arith.addf %44, %43 : vector<8x16xf32>
    %46 = arith.mulf %8, %45 : vector<8x16xf32>
    %47 = arith.truncf %46 : vector<8x16xf32> to vector<8x16xbf16>
    %c0_20 = arith.constant 0 : index
    %c0_21 = arith.constant 0 : index
    %48 = vector.load %arg4[%c0_20, %c0_21] : memref<16x128xbf16, #tpu.memory_space<vmem>>, vector<16x128xbf16>
    %cst_22 = arith.constant dense<0.000000e+00> : vector<8x128xf32>
    %49 = tpu.matmul %47, %48, %cst_22 {dimension_numbers = #tpu.dot_dimension_numbers<[1], [0], [0], [1], [0, 0, 1, 1], [], []>} : vector<8x16xbf16>, vector<16x128xbf16>, vector<8x128xf32> -> vector<8x128xf32>
    %c0_23 = arith.constant 0 : index
    %c0_24 = arith.constant 0 : index
    %50 = vector.load %arg5[%c0_23, %c0_24] : memref<1x128xf32, #tpu.memory_space<vmem>>, vector<1x128xf32>
    %51 = vector.broadcast %50 : vector<1x128xf32> to vector<8x128xf32>
    %52 = arith.addf %49, %51 : vector<8x128xf32>
    %c0_25 = arith.constant 0 : index
    %c0_26 = arith.constant 0 : index
    %53 = vector.load %arg6[%c0_25, %c0_26] : memref<8x128xf32, #tpu.memory_space<vmem>>, vector<8x128xf32>
    tpu.vector_store %arg6[%c0_25, %c0_26], %52 {strides = array<i32>} : memref<8x128xf32, #tpu.memory_space<vmem>>, vector<8x128xf32>,
    return
  }
  func.func @transform_0(%arg0: i32) -> (i32, i32) {
    %c0_i32 = arith.constant 0 : i32
    %c0_i32_0 = arith.constant 0 : i32
    return %arg0, %c0_i32 : i32, i32
  }
  func.func @transform_1(%arg0: i32) -> (i32, i32) {
    %c0_i32 = arith.constant 0 : i32
    %c0_i32_0 = arith.constant 0 : i32
    %c0_i32_1 = arith.constant 0 : i32
    return %c0_i32, %c0_i32_0 : i32, i32
  }
  func.func @transform_2(%arg0: i32) -> (i32, i32) {
    %c0_i32 = arith.constant 0 : i32
    %c0_i32_0 = arith.constant 0 : i32
    %c0_i32_1 = arith.constant 0 : i32
    return %c0_i32, %c0_i32_0 : i32, i32
  }
  func.func @transform_3(%arg0: i32) -> (i32, i32) {
    %c0_i32 = arith.constant 0 : i32
    %c0_i32_0 = arith.constant 0 : i32
    %c0_i32_1 = arith.constant 0 : i32
    return %c0_i32, %c0_i32_0 : i32, i32
  }
  func.func @transform_4(%arg0: i32) -> (i32, i32) {
    %c0_i32 = arith.constant 0 : i32
    %c0_i32_0 = arith.constant 0 : i32
    %c0_i32_1 = arith.constant 0 : i32
    return %c0_i32, %c0_i32_0 : i32, i32
  }
  func.func @transform_5(%arg0: i32) -> (i32, i32) {
    %c0_i32 = arith.constant 0 : i32
    %c0_i32_0 = arith.constant 0 : i32
    return %arg0, %c0_i32 : i32, i32
  }
}

module attributes {stable_mosaic.version = 11 : i64} {
  func.func @_prompt_mlp_kernel(%arg0: i32, %arg1: memref<8x64xf32, #tpu.memory_space<vmem>>, %arg2: memref<64x16xbf16, #tpu.memory_space<vmem>>, %arg3: memref<1x16xf32, #tpu.memory_space<vmem>>, %arg4: memref<16x128xbf16, #tpu.memory_space<vmem>>, %arg5: memref<1x128xf32, #tpu.memory_space<vmem>>, %arg6: memref<8x128xf32, #tpu.memory_space<vmem>>) attributes {dimension_semantics = [#tpu.dimension_semantics<parallel>], iteration_bounds = array<i64: 2>, scalar_prefetch = 0 : i64, scratch_operands = 0 : i64, tpu.core_type = #tpu.core_type<tc>, window_params = [{transform_indices = @transform_0, window_bounds = array<i64: 8, 64>}, {pipeline_mode = #tpu.pipeline_mode<synchronous>, transform_indices = @transform_1, window_bounds = array<i64: 64, 16>}, {pipeline_mode = #tpu.pipeline_mode<synchronous>, transform_indices = @transform_2, window_bounds = array<i64: 1, 16>}, {pipeline_mode = #tpu.pipeline_mode<synchronous>, transform_indices = @transform_3, window_bounds = array<i64: 16, 128>}, {pipeline_mode = #tpu.pipeline_mode<synchronous>, transform_indices = @transform_4, window_bounds = array<i64: 1, 128>}, {transform_indices = @transform_5, window_bounds = array<i64: 8, 128>}]} {
    %c0 = arith.constant 0 : index
    %c0_0 = arith.constant 0 : index
    %0 = vector.load %arg1[%c0, %c0_0] : memref<8x64xf32, #tpu.memory_space<vmem>>, vector<8x64xf32>
    %1 = arith.truncf %0 : vector<8x64xf32> to vector<8x64xbf16>
    %c0_1 = arith.constant 0 : index
    %c0_2 = arith.constant 0 : index
    %2 = vector.load %arg2[%c0_1, %c0_2] : memref<64x16xbf16, #tpu.memory_space<vmem>>, vector<64x16xbf16>
    %cst = arith.constant dense<0.000000e+00> : vector<8x16xf32>
    %3 = tpu.matmul %1, %2, %cst {dimension_numbers = #tpu.dot_dimension_numbers<[1], [0], [0], [1], [0, 0, 1, 1], [], []>} : vector<8x64xbf16>, vector<64x16xbf16>, vector<8x16xf32> -> vector<8x16xf32>
    %c0_3 = arith.constant 0 : index
    %c0_4 = arith.constant 0 : index
    %4 = vector.load %arg3[%c0_3, %c0_4] : memref<1x16xf32, #tpu.memory_space<vmem>>, vector<1x16xf32>
    %5 = vector.broadcast %4 : vector<1x16xf32> to vector<8x16xf32>
    %6 = arith.addf %3, %5 : vector<8x16xf32>
    %cst_5 = arith.constant 5.000000e-01 : f32
    %7 = vector.broadcast %cst_5 : f32 to vector<8x16xf32>
    %8 = arith.mulf %7, %6 : vector<8x16xf32>
    %cst_6 = arith.constant 0.707106769 : f32
    %9 = vector.broadcast %cst_6 : f32 to vector<8x16xf32>
    %10 = arith.mulf %6, %9 : vector<8x16xf32>
    %cst_7 = arith.constant 0.000000e+00 : f32
    %11 = vector.broadcast %cst_7 : f32 to vector<8x16xf32>
    %12 = arith.cmpf oge, %10, %11 : vector<8x16xf32>
    %cst_8 = arith.constant 1.000000e+00 : f32
    %cst_9 = arith.constant -1.000000e+00 : f32
    %13 = vector.broadcast %cst_8 : f32 to vector<8x16xf32>
    %14 = vector.broadcast %cst_9 : f32 to vector<8x16xf32>
    %15 = arith.select %12, %13, %14 : vector<8x16xi1>, vector<8x16xf32>
    %16 = math.absf %10 : vector<8x16xf32>
    %cst_10 = arith.constant 0.327591091 : f32
    %17 = vector.broadcast %cst_10 : f32 to vector<8x16xf32>
    %18 = arith.mulf %17, %16 : vector<8x16xf32>
    %cst_11 = arith.constant 1.000000e+00 : f32
    %19 = vector.broadcast %cst_11 : f32 to vector<8x16xf32>
    %20 = arith.addf %19, %18 : vector<8x16xf32>
    %21 = tpu.reciprocal %20 {approx = true} : vector<8x16xf32> -> vector<8x16xf32>
    %cst_12 = arith.constant 1.06140542 : f32
    %22 = vector.broadcast %cst_12 : f32 to vector<8x16xf32>
    %23 = arith.mulf %22, %21 : vector<8x16xf32>
    %cst_13 = arith.constant -1.45315206 : f32
    %24 = vector.broadcast %cst_13 : f32 to vector<8x16xf32>
    %25 = arith.addf %23, %24 : vector<8x16xf32>
    %26 = arith.mulf %25, %21 : vector<8x16xf32>
    %cst_14 = arith.constant 1.42141378 : f32
    %27 = vector.broadcast %cst_14 : f32 to vector<8x16xf32>
    %28 = arith.addf %26, %27 : vector<8x16xf32>
    %29 = arith.mulf %28, %21 : vector<8x16xf32>
    %cst_15 = arith.constant -0.284496725 : f32
    %30 = vector.broadcast %cst_15 : f32 to vector<8x16xf32>
    %31 = arith.addf %29, %30 : vector<8x16xf32>
    %32 = arith.mulf %31, %21 : vector<8x16xf32>
    %cst_16 = arith.constant 0.254829586 : f32
    %33 = vector.broadcast %cst_16 : f32 to vector<8x16xf32>
    %34 = arith.addf %32, %33 : vector<8x16xf32>
    %35 = arith.mulf %34, %21 : vector<8x16xf32>
    %cst_17 = arith.constant 0.000000e+00 : f32
    %36 = vector.broadcast %cst_17 : f32 to vector<8x16xf32>
    %37 = arith.subf %36, %16 : vector<8x16xf32>
    %38 = arith.mulf %37, %16 : vector<8x16xf32>
    %39 = math.exp %38 : vector<8x16xf32>
    %40 = arith.mulf %35, %39 : vector<8x16xf32>
    %cst_18 = arith.constant 1.000000e+00 : f32
    %41 = vector.broadcast %cst_18 : f32 to vector<8x16xf32>
    %42 = arith.subf %41, %40 : vector<8x16xf32>
    %43 = arith.mulf %15, %42 : vector<8x16xf32>
    %cst_19 = arith.constant 1.000000e+00 : f32
    %44 = vector.broadcast %cst_19 : f32 to vector<8x16xf32>
    %45 = arith.addf %44, %43 : vector<8x16xf32>
    %46 = arith.mulf %8, %45 : vector<8x16xf32>
    %47 = arith.truncf %46 : vector<8x16xf32> to vector<8x16xbf16>
    %c0_20 = arith.constant 0 : index
    %c0_21 = arith.constant 0 : index
    %48 = vector.load %arg4[%c0_20, %c0_21] : memref<16x128xbf16, #tpu.memory_space<vmem>>, vector<16x128xbf16>
    %cst_22 = arith.constant dense<0.000000e+00> : vector<8x128xf32>
    %49 = tpu.matmul %47, %48, %cst_22 {dimension_numbers = #tpu.dot_dimension_numbers<[1], [0], [0], [1], [0, 0, 1, 1], [], []>} : vector<8x16xbf16>, vector<16x128xbf16>, vector<8x128xf32> -> vector<8x128xf32>
    %c0_23 = arith.constant 0 : index
    %c0_24 = arith.constant 0 : index
    %50 = vector.load %arg5[%c0_23, %c0_24] : memref<1x128xf32, #tpu.memory_space<vmem>>, vector<1x128xf32>
    %51 = vector.broadcast %50 : vector<1x128xf32> to vector<8x128xf32>
    %52 = arith.addf %49, %51 : vector<8x128xf32>
    %c0_25 = arith.constant 0 : index
    %c0_26 = arith.constant 0 : index
    %53 = vector.load %arg6[%c0_25, %c0_26] : memref<8x128xf32, #tpu.memory_space<vmem>>, vector<8x128xf32>
    tpu.vector_store %arg6[%c0_25, %c0_26], %52 {strides = array<i32>} : memref<8x128xf32, #tpu.memory_space<vmem>>, vector<8x128xf32>,
    return
  }
  func.func @transform_0(%arg0: i32) -> (i32, i32) {
    %c0_i32 = arith.constant 0 : i32
    %c0_i32_0 = arith.constant 0 : i32
    return %arg0, %c0_i32 : i32, i32
  }
  func.func @transform_1(%arg0: i32) -> (i32, i32) {
    %c0_i32 = arith.constant 0 : i32
    %c0_i32_0 = arith.constant 0 : i32
    %c0_i32_1 = arith.constant 0 : i32
    return %c0_i32, %c0_i32_0 : i32, i32
  }
  func.func @transform_2(%arg0: i32) -> (i32, i32) {
    %c0_i32 = arith.constant 0 : i32
    %c0_i32_0 = arith.constant 0 : i32
    %c0_i32_1 = arith.constant 0 : i32
    return %c0_i32, %c0_i32_0 : i32, i32
  }
  func.func @transform_3(%arg0: i32) -> (i32, i32) {
    %c0_i32 = arith.constant 0 : i32
    %c0_i32_0 = arith.constant 0 : i32
    %c0_i32_1 = arith.constant 0 : i32
    return %c0_i32, %c0_i32_0 : i32, i32
  }
  func.func @transform_4(%arg0: i32) -> (i32, i32) {
    %c0_i32 = arith.constant 0 : i32
    %c0_i32_0 = arith.constant 0 : i32
    %c0_i32_1 = arith.constant 0 : i32
    return %c0_i32, %c0_i32_0 : i32, i32
  }
  func.func @transform_5(%arg0: i32) -> (i32, i32) {
    %c0_i32 = arith.constant 0 : i32
    %c0_i32_0 = arith.constant 0 : i32
    return %arg0, %c0_i32 : i32, i32
  }
}

</mosaic_0001>

<llo_original>
// kernel: tpu_custom_call.1
$region0: #{tpu_custom_call.1}
  #allocation0 [shape = 'u32[]', space=smem, size = 0x4, offset = 0x4, fixed_abs, tag = 'smem constant byte address 0x4 - core index']
  #allocation1 [shape = 'u32[72,128]{1,0:T(1,128)}', space=vmem, size = 0x9000, scoped, tag = 'internal scratch']
  %s0 = inlined_call_operand.vmem [shape: f32[16,64], index: 0, kind: input, shape index: {}]
  %s1 = inlined_call_operand.vmem [shape: bf16[64,16], index: 1, kind: input, shape index: {}]
  %s2 = inlined_call_operand.vmem [shape: f32[1,16], index: 2, kind: input, shape index: {}]
  %s3 = inlined_call_operand.vmem [shape: bf16[16,128], index: 3, kind: input, shape index: {}]
  %s4 = inlined_call_operand.vmem [shape: f32[1,128], index: 4, kind: input, shape index: {}]
  %s5 = inlined_call_operand.hbm [shape: f32[16,128], index: 5, kind: output, shape index: {}]
  %s6 = sld [smem:[#allocation0]]
  $region53: #{tpu_custom_call.1} parent=0
    _
  %s8 = ssub.s32 1, %s6
  %s9 = scalar_select 0, %s8, %s6
  $region1: #{tpu_custom_call.1} parent=0
    #allocation2 [shape = 'u8[8192]{0}', space=vmem, size = 0x2000, scoped, tag = 'output window, operand 0']
    #allocation3 [shape = 's32[2]{0}', space=sflag, size = 0x8, scoped, tag = 'scoped memory for tpu_custom_call.1']
    %10 = vsyncpa [#allocation3], 0
    %s11 = scalar_lea.sflag [#allocation3], 1
    %12 = vsyncpa %s11, 0
    loop: start=0, step=1, limit=4
    $region2: #{tpu_custom_call.1} parent=1 // loop_pre_header
      _
    $region3: #{tpu_custom_call.1} parent=1 // loop_header
      %s14 = sphi 0, %s18
      %p15 = scmp.ge.s32.totalorder %s14, 4
      %s24 = sphi 0, %s26
      %s27 = sphi 0, %s24
      %s28 = sphi 0, %s27
      %s44 = sphi 0, %s28
      %s48 = sphi 0, %s48
      %s50 = sphi 0, %s48
      %s51 = sphi 0, %s50
      %s65 = sphi 0, %s51
      %s69 = sphi 0, %s69
      %s71 = sphi 0, %s69
      %s72 = sphi 0, %s71
      %s86 = sphi 0, %s72
      %s90 = sphi 0, %s90
      %s92 = sphi 0, %s90
      %s93 = sphi 0, %s92
      %s107 = sphi 0, %s93
      %s111 = sphi 0, %s111
      %s113 = sphi 0, %s111
      %s114 = sphi 0, %s113
      %s128 = sphi 0, %s114
      %s134 = sphi 0, %s136
      %s137 = sphi 0, %s134
      %s138 = sphi 0, %s137
      %s154 = sphi 0, %s138
    $region4: #{tpu_custom_call.1} parent=1 // loop_header_branch
      %17 = sbr.rel (%p15) target = $region8
    $region5: #{tpu_custom_call.1} parent=1 // loop_body
      %s19 = ssub.s32 %s14, 1
      %s20 = ssub.s32 %s14, 2
      %s21 = sadd.s32 %s14, 1
      %s22 = ssub.s32 %s14, %s21
      %p23 = scmp.eq.s32.totalorder %s22, 0
      %s25 = sadd.s32 %s24, 1
      %s26 = scalar_select %p23, %s24, %s25
      %p29 = pneg %p23
      %p30 = scmp.eq.s32.totalorder %s14, 1
      %p31 = por %p29, %p30
      %p32 = scmp.ne.s32.totalorder %s24, %s27
      %p33 = scmp.eq.s32.totalorder %s14, 0
      %p34 = por %p32, %p33
      %p35 = scmp.ne.s32.totalorder %s24, %s27
      %p36 = scmp.eq.s32.totalorder %s19, 1
      %p37 = por %p35, %p36
      %p38 = scmp.ne.s32.totalorder %s27, %s28
      %p39 = scmp.eq.s32.totalorder %s19, 0
      %p40 = por %p38, %p39
      %p41 = scmp.ne.s32.totalorder %s27, %s28
      %p42 = scmp.eq.s32.totalorder %s20, 1
      %p43 = por %p41, %p42
      %p45 = scmp.ne.s32.totalorder %s28, %s44
      %p46 = scmp.eq.s32.totalorder %s20, 0
      %p47 = por %p45, %p46
      %s49 = sadd.s32 %s48, 1
      %p52 = scmp.eq.s32.totalorder %s14, 1
      %p53 = scmp.ne.s32.totalorder %s48, %s50
      %p54 = scmp.eq.s32.totalorder %s14, 0
      %p55 = por %p53, %p54
      %p56 = scmp.ne.s32.totalorder %s48, %s50
      %p57 = scmp.eq.s32.totalorder %s19, 1
      %p58 = por %p56, %p57
      %p59 = scmp.ne.s32.totalorder %s50, %s51
      %p60 = scmp.eq.s32.totalorder %s19, 0
      %p61 = por %p59, %p60
      %p62 = scmp.ne.s32.totalorder %s50, %s51
      %p63 = scmp.eq.s32.totalorder %s20, 1
      %p64 = por %p62, %p63
      %p66 = scmp.ne.s32.totalorder %s51, %s65
      %p67 = scmp.eq.s32.totalorder %s20, 0
      %p68 = por %p66, %p67
      %s70 = sadd.s32 %s69, 1
      %p73 = scmp.eq.s32.totalorder %s14, 1
      %p74 = scmp.ne.s32.totalorder %s69, %s71
      %p75 = scmp.eq.s32.totalorder %s14, 0
      %p76 = por %p74, %p75
      %p77 = scmp.ne.s32.totalorder %s69, %s71
      %p78 = scmp.eq.s32.totalorder %s19, 1
      %p79 = por %p77, %p78
      %p80 = scmp.ne.s32.totalorder %s71, %s72
      %p81 = scmp.eq.s32.totalorder %s19, 0
      %p82 = por %p80, %p81
      %p83 = scmp.ne.s32.totalorder %s71, %s72
      %p84 = scmp.eq.s32.totalorder %s20, 1
      %p85 = por %p83, %p84
      %p87 = scmp.ne.s32.totalorder %s72, %s86
      %p88 = scmp.eq.s32.totalorder %s20, 0
      %p89 = por %p87, %p88
      %s91 = sadd.s32 %s90, 1
      %p94 = scmp.eq.s32.totalorder %s14, 1
      %p95 = scmp.ne.s32.totalorder %s90, %s92
      %p96 = scmp.eq.s32.totalorder %s14, 0
      %p97 = por %p95, %p96
      %p98 = scmp.ne.s32.totalorder %s90, %s92
      %p99 = scmp.eq.s32.totalorder %s19, 1
      %p100 = por %p98, %p99
      %p101 = scmp.ne.s32.totalorder %s92, %s93
      %p102 = scmp.eq.s32.totalorder %s19, 0
      %p103 = por %p101, %p102
      %p104 = scmp.ne.s32.totalorder %s92, %s93
      %p105 = scmp.eq.s32.totalorder %s20, 1
      %p106 = por %p104, %p105
      %p108 = scmp.ne.s32.totalorder %s93, %s107
      %p109 = scmp.eq.s32.totalorder %s20, 0
      %p110 = por %p108, %p109
      %s112 = sadd.s32 %s111, 1
      %p115 = scmp.eq.s32.totalorder %s14, 1
      %p116 = scmp.ne.s32.totalorder %s111, %s113
      %p117 = scmp.eq.s32.totalorder %s14, 0
      %p118 = por %p116, %p117
      %p119 = scmp.ne.s32.totalorder %s111, %s113
      %p120 = scmp.eq.s32.totalorder %s19, 1
      %p121 = por %p119, %p120
      %p122 = scmp.ne.s32.totalorder %s113, %s114
      %p123 = scmp.eq.s32.totalorder %s19, 0
      %p124 = por %p122, %p123
      %p125 = scmp.ne.s32.totalorder %s113, %s114
      %p126 = scmp.eq.s32.totalorder %s20, 1
      %p127 = por %p125, %p126
      %p129 = scmp.ne.s32.totalorder %s114, %s128
      %p130 = scmp.eq.s32.totalorder %s20, 0
      %p131 = por %p129, %p130
      %s132 = ssub.s32 %s14, %s21
      %p133 = scmp.eq.s32.totalorder %s132, 0
      %s135 = sadd.s32 %s134, 1
      %s136 = scalar_select %p133, %s134, %s135
      %p139 = pneg %p133
      %p140 = scmp.eq.s32.totalorder %s14, 1
      %p141 = por %p139, %p140
      %p142 = scmp.ne.s32.totalorder %s134, %s137
      %p143 = scmp.eq.s32.totalorder %s14, 0
      %p144 = por %p142, %p143
      %p145 = scmp.ne.s32.totalorder %s134, %s137
      %p146 = scmp.eq.s32.totalorder %s19, 1
      %p147 = por %p145, %p146
      %p148 = scmp.ne.s32.totalorder %s137, %s138
      %p149 = scmp.eq.s32.totalorder %s19, 0
      %p150 = por %p148, %p149
      %p151 = scmp.ne.s32.totalorder %s137, %s138
      %p152 = scmp.eq.s32.totalorder %s20, 1
      %p153 = por %p151, %p152
      %p155 = scmp.ne.s32.totalorder %s138, %s154
      %p156 = scmp.eq.s32.totalorder %s20, 0
      %p157 = por %p155, %p156
      %p158 = scmp.le.s32.totalorder 1, %s14
      %p159 = scmp.lt.s32.totalorder %s14, 3
      %p160 = pnand %p158, %p159
      %p161 = pneg %p160
      // Predicated region
      $region9: #{tpu_custom_call.1} parent=5 // pred_check
        _
      $region10: #{tpu_custom_call.1} parent=5 // pred_check_branch
        %163 = sbr.rel (%p160) target = $region12
      $region11: #{tpu_custom_call.1} parent=5 // pred_region
        %s164 = ssub.s32 %s14, 1
        // Predicated region
        $region13: #{tpu_custom_call.1} parent=11 // pred_check
          %p165 = pneg %p61
        $region14: #{tpu_custom_call.1} parent=11 // pred_check_branch
          %167 = sbr.rel (%p165) target = $region16
        $region15: #{tpu_custom_call.1} parent=11 // pred_region
          _
        $region16: #{tpu_custom_call.1} parent=11 // pred_fallthru
          _
        // Predicated region
        $region17: #{tpu_custom_call.1} parent=11 // pred_check
          %p168 = pneg %p82
        $region18: #{tpu_custom_call.1} parent=11 // pred_check_branch
          %170 = sbr.rel (%p168) target = $region20
        $region19: #{tpu_custom_call.1} parent=11 // pred_region
          _
        $region20: #{tpu_custom_call.1} parent=11 // pred_fallthru
          _
        // Predicated region
        $region21: #{tpu_custom_call.1} parent=11 // pred_check
          %p171 = pneg %p103
        $region22: #{tpu_custom_call.1} parent=11 // pred_check_branch
          %173 = sbr.rel (%p171) target = $region24
        $region23: #{tpu_custom_call.1} parent=11 // pred_region
          _
        $region24: #{tpu_custom_call.1} parent=11 // pred_fallthru
          _
        // Predicated region
        $region25: #{tpu_custom_call.1} parent=11 // pred_check
          %p174 = pneg %p124
        $region26: #{tpu_custom_call.1} parent=11 // pred_check_branch
          %176 = sbr.rel (%p174) target = $region28
        $region27: #{tpu_custom_call.1} parent=11 // pred_region
          _
        $region28: #{tpu_custom_call.1} parent=11 // pred_fallthru
          _
      $region12: #{tpu_custom_call.1} parent=5 // pred_fallthru
        _
      %p177 = scmp.lt.s32.totalorder %s14, 2
      // Predicated region
      $region29: #{tpu_custom_call.1} parent=5 // pred_check
        %p178 = pneg %p177
      $region30: #{tpu_custom_call.1} parent=5 // pred_check_branch
        %180 = sbr.rel (%p178) target = $region32
      $region31: #{tpu_custom_call.1} parent=5 // pred_region
        // Predicated region
        $region33: #{tpu_custom_call.1} parent=31 // pred_check
          %p181 = pneg %p34
        $region34: #{tpu_custom_call.1} parent=31 // pred_check_branch
          %183 = sbr.rel (%p181) target = $region36
        $region35: #{tpu_custom_call.1} parent=31 // pred_region
          %p184 = scmp.lt.s32.totalorder %s14, 1
          %s185 = scalar_select %p184, %s14, 1
          %s186 = smul.addr %s185, 8
          %s187 = scalar_lea.vmem %s0, %s186
        $region36: #{tpu_custom_call.1} parent=31 // pred_fallthru
          _
      $region32: #{tpu_custom_call.1} parent=5 // pred_fallthru
        _
      %p188 = scmp.le.s32.totalorder 1, %s14
      %p189 = scmp.lt.s32.totalorder %s14, 3
      %p190 = pnand %p188, %p189
      %p191 = pneg %p190
      // Predicated region
      $region37: #{tpu_custom_call.1} parent=5 // pred_check
        _
      $region38: #{tpu_custom_call.1} parent=5 // pred_check_branch
        %193 = sbr.rel (%p190) target = $region40
      $region39: #{tpu_custom_call.1} parent=5 // pred_region
        %s194 = ssub.s32 %s14, 1
        %p195 = scmp.lt.s32.totalorder %s19, 1
        %s196 = scalar_select %p195, %s19, 1
        %s197 = smul.addr %s196, 8
        %s198 = scalar_lea.vmem %s0, %s197
        %p199 = pneg %p40
        %p200 = pneg %p37
        %p201 = pneg %p61
        %p202 = pneg %p58
        %p203 = pneg %p82
        %p204 = pneg %p79
        %p205 = pneg %p103
        %p206 = pneg %p100
        %p207 = pneg %p124
        %p208 = pneg %p121
        %p209 = pneg %p150
        %p210 = pneg %p147
        %s211 = sand.u32 %s137, 1
        %s212 = scalar_lea.sflag [#allocation3], %s211
        %s213 = sand.u32 %s137, 1
        %s214 = smul.addr %s213, 8
        %s215 = scalar_lea.vmem [#allocation2], %s214
        %p216 = scmp.lt.s32.totalorder %s19, 1
        %s217 = scalar_select %p216, %s19, 1
        %s218 = smul.addr %s217, 8
        %s219 = scalar_lea.vmem %s0, %s218
        %v221 = vld [vmem:[%s219] sm:$0xff]
        %v222 = vpack.c.bf16 %v221, %v221
        %v223 = vld [vmem:[%s1] sm:$0xf]
        %v224 = vld [vmem:[%s1 + $0x4] sm:$0xf]
        %v225 = vld [vmem:[%s1 + $0x8] sm:$0xf]
        %v226 = vld [vmem:[%s1 + $0xc] sm:$0xf]
        %v227 = vld [vmem:[%s1 + $0x10] sm:$0xf]
        %v228 = vld [vmem:[%s1 + $0x14] sm:$0xf]
        %v229 = vld [vmem:[%s1 + $0x18] sm:$0xf]
        %v230 = vld [vmem:[%s1 + $0x1c] sm:$0xf]
        %v231 = vld [vmem:[%s2] sm:$0x1]
        %v233 = vperm.slane %v231, 0
        %v243 = vunpack.c.l.b16 %v223
        %v244 = vunpack.c.l.b16 %v224
        %v245 = vunpack.c.l.b16 %v225
        %v246 = vunpack.c.l.b16 %v226
        %v247 = vunpack.c.l.b16 %v227
        %v248 = vunpack.c.l.b16 %v228
        %v249 = vunpack.c.l.b16 %v229
        %v250 = vunpack.c.l.b16 %v230
        %v251 = vpack.c.b16 %v244, %v243
        %v252 = vpack.c.b16 %v246, %v245
        %v253 = vpack.c.b16 %v248, %v247
        %v254 = vpack.c.b16 %v250, %v249
        %vm259 = vcmask 523264
        %v261 = vsel %vm259, %v222, 0
        %263 = vmatpush.bf16.msra.mxu0 0
        %264 = vmatpush.bf16.msra.mxu0 0
        %265 = vmatpush.bf16.msra.mxu0 0
        %266 = vmatpush.bf16.msra.mxu0 0
        %267 = vmatpush.bf16.msra.mxu0 %v254
        %268 = vmatpush.bf16.msra.mxu0 %v253
        %269 = vmatpush.bf16.msra.mxu0 %v252
        %270 = vmatpush.bf16.msra.mxu0 %v251
        %271 = vmatmul.bf16.gmra.mxu0 %v261
        %v272 = vpop.f32.mrf.mxu0
        %v273 = vadd.f32 %v233, %v272
        %v274 = vpop.f32.mrf.mxu0
        %275 = vdwg.mxu0
        %v276 = vmul.f32 %v273, 0.5
        %v277 = vmul.f32 %v273, 0.70710677
        %vm278 = vcmp.ge.f32.partialorder %v277, 0.0
        %v279 = vsel %vm278, 1.0, -1.0
        %v280 = vand.u32 2147483647, %v277
        %v281 = vmul.f32 %v280, 0.3275911
        %v282 = vadd.f32 %v281, 1.0
        %v283 = vrcp.pop %v282
        %v284 = vmul.f32 %v283, 1.0614054
        %v285 = vadd.f32 %v284, -1.4531521
        %v286 = vmul.f32 %v285, %v283
        %v287 = vadd.f32 %v286, 1.4214138
        %v288 = vmul.f32 %v287, %v283
        %v289 = vadd.f32 %v288, -0.28449672
        %v290 = vmul.f32 %v289, %v283
        %v291 = vadd.f32 %v290, 0.2548296
        %v292 = vmul.f32 %v291, %v283
        %v293 = vsub.f32 0.0, %v280
        %v294 = vmul.f32 %v293, %v280
        %v295 = vmul.f32 %v294, 1.442695
        %v296 = vpow.pop %v295
        %v297 = vmul.f32 %v292, %v296
        %v298 = vsub.f32 1.0, %v297
        %v299 = vmul.f32 %v279, %v298
        %v300 = vadd.f32 %v299, 1.0
        %v301 = vmul.f32 %v276, %v300
        %v302 = vpack.c.bf16 %v301, %v301
        %v303 = vld [vmem:[%s3] sm:$0xf]
        %v304 = vld [vmem:[%s3 + $0x4] sm:$0xf]
        %v305 = vld [vmem:[%s4] sm:$0x1]
        %v307 = vperm.slane %v305, 0
        %v311 = vunpack.c.l.b16 %v303
        %v312 = vunpack.c.l.b16 %v304
        %v313 = vpack.c.b16 %v312, %v311
        %vm315 = vcmask 130048
        %v317 = vsel %vm315, %v302, 0
        %319 = vmatpush.bf16.msra.mxu0 0
        %320 = vmatpush.bf16.msra.mxu0 0
        %321 = vmatpush.bf16.msra.mxu0 0
        %322 = vmatpush.bf16.msra.mxu0 0
        %323 = vmatpush.bf16.msra.mxu0 0
        %324 = vmatpush.bf16.msra.mxu0 0
        %325 = vmatpush.bf16.msra.mxu0 0
        %326 = vmatpush.bf16.msra.mxu0 %v313
        %327 = vmatmul.bf16.gmra.mxu0 %v317
        %v328 = vpop.f32.mrf.mxu0
        %v329 = vadd.f32 %v307, %v328
        %v330 = vpop.f32.mrf.mxu0
        %331 = vdwg.mxu0
        %332 = vst [vmem:[%s215] sm:$0xff] %v329
        %s333 = sand.u32 %s137, 1
        %s334 = scalar_lea.sflag [#allocation3], %s333
        %s335 = sand.u32 %s137, 1
        %s336 = smul.addr %s335, 8
        %s337 = scalar_lea.vmem [#allocation2], %s336
        // Predicated region
        $region41: #{tpu_custom_call.1} parent=39 // pred_check
          %p338 = pneg %p147
        $region42: #{tpu_custom_call.1} parent=39 // pred_check_branch
          %340 = sbr.rel (%p338) target = $region44
        $region43: #{tpu_custom_call.1} parent=39 // pred_region
          %342 = vsyncadd %s334, 0
          %s343 = smul.addr %s19, 8
          %s344 = scalar_lea.hbm %s5, %s343
          %s346 = sshll.u32 %s337, 4
          %s347 = int_to_ptr.vmem [resolvable:$true] %s346
          %s348 = sshll.u32 %s344, 4
          %s349 = int_to_ptr.hbm [resolvable:$true] %s348
          %351 = dma.vmem_to_hbm [thread:$0]  %s347, 128, %s349, %s334
        $region44: #{tpu_custom_call.1} parent=39 // pred_fallthru
          _
      $region40: #{tpu_custom_call.1} parent=5 // pred_fallthru
        _
      %p352 = scmp.le.s32.totalorder 2, %s14
      // Predicated region
      $region45: #{tpu_custom_call.1} parent=5 // pred_check
        %p353 = pneg %p352
      $region46: #{tpu_custom_call.1} parent=5 // pred_check_branch
        %355 = sbr.rel (%p353) target = $region48
      $region47: #{tpu_custom_call.1} parent=5 // pred_region
        %s356 = ssub.s32 %s14, 2
        // Predicated region
        $region49: #{tpu_custom_call.1} parent=47 // pred_check
          %p357 = pneg %p153
        $region50: #{tpu_custom_call.1} parent=47 // pred_check_branch
          %359 = sbr.rel (%p357) target = $region52
        $region51: #{tpu_custom_call.1} parent=47 // pred_region
          %s360 = sand.u32 %s138, 1
          %s361 = scalar_lea.sflag [#allocation3], %s360
          %s362 = sand.u32 %s138, 1
          %s363 = smul.addr %s362, 8
          %s364 = scalar_lea.vmem [#allocation2], %s363
          %366 = dma.done %s361, 128
        $region52: #{tpu_custom_call.1} parent=47 // pred_fallthru
          _
      $region48: #{tpu_custom_call.1} parent=5 // pred_fallthru
        _
    $region6: #{tpu_custom_call.1} parent=1 // loop_footer
      %s18 = sadd.s32 1, %s14
    $region7: #{tpu_custom_call.1} parent=1 // loop_footer_branch
      %13 = sbr.rel target = $region3
    $region8: #{tpu_custom_call.1} parent=1 // loop_exit
      _
    %367 = vsyncpa [#allocation3], 1
    %s368 = scalar_lea.sflag [#allocation3], 1
    %369 = vsyncpa %s368, 1

// kernel: tpu_custom_call.1
$region0: #{tpu_custom_call.1}
  #allocation0 [shape = 'u32[]', space=smem, size = 0x4, offset = 0x4, fixed_abs, tag = 'smem constant byte address 0x4 - core index']
  #allocation1 [shape = 'u32[72,128]{1,0:T(1,128)}', space=vmem, size = 0x9000, scoped, tag = 'internal scratch']
  %s0 = inlined_call_operand.vmem [shape: f32[16,64], index: 0, kind: input, shape index: {}]
  %s1 = inlined_call_operand.vmem [shape: bf16[64,16], index: 1, kind: input, shape index: {}]
  %s2 = inlined_call_operand.vmem [shape: f32[1,16], index: 2, kind: input, shape index: {}]
  %s3 = inlined_call_operand.vmem [shape: bf16[16,128], index: 3, kind: input, shape index: {}]
  %s4 = inlined_call_operand.vmem [shape: f32[1,128], index: 4, kind: input, shape index: {}]
  %s5 = inlined_call_operand.hbm [shape: f32[16,128], index: 5, kind: output, shape index: {}]
  %s6 = sld [smem:[#allocation0]]
  $region53: #{tpu_custom_call.1} parent=0
    _
  %s8 = ssub.s32 1, %s6
  %s9 = scalar_select 0, %s8, %s6
  $region1: #{tpu_custom_call.1} parent=0
    #allocation2 [shape = 'u8[8192]{0}', space=vmem, size = 0x2000, scoped, tag = 'output window, operand 0']
    #allocation3 [shape = 's32[2]{0}', space=sflag, size = 0x8, scoped, tag = 'scoped memory for tpu_custom_call.1']
    %10 = vsyncpa [#allocation3], 0
    %s11 = scalar_lea.sflag [#allocation3], 1
    %12 = vsyncpa %s11, 0
    loop: start=0, step=1, limit=4
    $region2: #{tpu_custom_call.1} parent=1 // loop_pre_header
      _
    $region3: #{tpu_custom_call.1} parent=1 // loop_header
      %s14 = sphi 0, %s18
      %p15 = scmp.ge.s32.totalorder %s14, 4
      %s24 = sphi 0, %s26
      %s27 = sphi 0, %s24
      %s28 = sphi 0, %s27
      %s44 = sphi 0, %s28
      %s48 = sphi 0, %s48
      %s50 = sphi 0, %s48
      %s51 = sphi 0, %s50
      %s65 = sphi 0, %s51
      %s69 = sphi 0, %s69
      %s71 = sphi 0, %s69
      %s72 = sphi 0, %s71
      %s86 = sphi 0, %s72
      %s90 = sphi 0, %s90
      %s92 = sphi 0, %s90
      %s93 = sphi 0, %s92
      %s107 = sphi 0, %s93
      %s111 = sphi 0, %s111
      %s113 = sphi 0, %s111
      %s114 = sphi 0, %s113
      %s128 = sphi 0, %s114
      %s134 = sphi 0, %s136
      %s137 = sphi 0, %s134
      %s138 = sphi 0, %s137
      %s154 = sphi 0, %s138
    $region4: #{tpu_custom_call.1} parent=1 // loop_header_branch
      %17 = sbr.rel (%p15) target = $region8
    $region5: #{tpu_custom_call.1} parent=1 // loop_body
      %s19 = ssub.s32 %s14, 1
      %s20 = ssub.s32 %s14, 2
      %s21 = sadd.s32 %s14, 1
      %s22 = ssub.s32 %s14, %s21
      %p23 = scmp.eq.s32.totalorder %s22, 0
      %s25 = sadd.s32 %s24, 1
      %s26 = scalar_select %p23, %s24, %s25
      %p29 = pneg %p23
      %p30 = scmp.eq.s32.totalorder %s14, 1
      %p31 = por %p29, %p30
      %p32 = scmp.ne.s32.totalorder %s24, %s27
      %p33 = scmp.eq.s32.totalorder %s14, 0
      %p34 = por %p32, %p33
      %p35 = scmp.ne.s32.totalorder %s24, %s27
      %p36 = scmp.eq.s32.totalorder %s19, 1
      %p37 = por %p35, %p36
      %p38 = scmp.ne.s32.totalorder %s27, %s28
      %p39 = scmp.eq.s32.totalorder %s19, 0
      %p40 = por %p38, %p39
      %p41 = scmp.ne.s32.totalorder %s27, %s28
      %p42 = scmp.eq.s32.totalorder %s20, 1
      %p43 = por %p41, %p42
      %p45 = scmp.ne.s32.totalorder %s28, %s44
      %p46 = scmp.eq.s32.totalorder %s20, 0
      %p47 = por %p45, %p46
      %s49 = sadd.s32 %s48, 1
      %p52 = scmp.eq.s32.totalorder %s14, 1
      %p53 = scmp.ne.s32.totalorder %s48, %s50
      %p54 = scmp.eq.s32.totalorder %s14, 0
      %p55 = por %p53, %p54
      %p56 = scmp.ne.s32.totalorder %s48, %s50
      %p57 = scmp.eq.s32.totalorder %s19, 1
      %p58 = por %p56, %p57
      %p59 = scmp.ne.s32.totalorder %s50, %s51
      %p60 = scmp.eq.s32.totalorder %s19, 0
      %p61 = por %p59, %p60
      %p62 = scmp.ne.s32.totalorder %s50, %s51
      %p63 = scmp.eq.s32.totalorder %s20, 1
      %p64 = por %p62, %p63
      %p66 = scmp.ne.s32.totalorder %s51, %s65
      %p67 = scmp.eq.s32.totalorder %s20, 0
      %p68 = por %p66, %p67
      %s70 = sadd.s32 %s69, 1
      %p73 = scmp.eq.s32.totalorder %s14, 1
      %p74 = scmp.ne.s32.totalorder %s69, %s71
      %p75 = scmp.eq.s32.totalorder %s14, 0
      %p76 = por %p74, %p75
      %p77 = scmp.ne.s32.totalorder %s69, %s71
      %p78 = scmp.eq.s32.totalorder %s19, 1
      %p79 = por %p77, %p78
      %p80 = scmp.ne.s32.totalorder %s71, %s72
      %p81 = scmp.eq.s32.totalorder %s19, 0
      %p82 = por %p80, %p81
      %p83 = scmp.ne.s32.totalorder %s71, %s72
      %p84 = scmp.eq.s32.totalorder %s20, 1
      %p85 = por %p83, %p84
      %p87 = scmp.ne.s32.totalorder %s72, %s86
      %p88 = scmp.eq.s32.totalorder %s20, 0
      %p89 = por %p87, %p88
      %s91 = sadd.s32 %s90, 1
      %p94 = scmp.eq.s32.totalorder %s14, 1
      %p95 = scmp.ne.s32.totalorder %s90, %s92
      %p96 = scmp.eq.s32.totalorder %s14, 0
      %p97 = por %p95, %p96
      %p98 = scmp.ne.s32.totalorder %s90, %s92
      %p99 = scmp.eq.s32.totalorder %s19, 1
      %p100 = por %p98, %p99
      %p101 = scmp.ne.s32.totalorder %s92, %s93
      %p102 = scmp.eq.s32.totalorder %s19, 0
      %p103 = por %p101, %p102
      %p104 = scmp.ne.s32.totalorder %s92, %s93
      %p105 = scmp.eq.s32.totalorder %s20, 1
      %p106 = por %p104, %p105
      %p108 = scmp.ne.s32.totalorder %s93, %s107
      %p109 = scmp.eq.s32.totalorder %s20, 0
      %p110 = por %p108, %p109
      %s112 = sadd.s32 %s111, 1
      %p115 = scmp.eq.s32.totalorder %s14, 1
      %p116 = scmp.ne.s32.totalorder %s111, %s113
      %p117 = scmp.eq.s32.totalorder %s14, 0
      %p118 = por %p116, %p117
      %p119 = scmp.ne.s32.totalorder %s111, %s113
      %p120 = scmp.eq.s32.totalorder %s19, 1
      %p121 = por %p119, %p120
      %p122 = scmp.ne.s32.totalorder %s113, %s114
      %p123 = scmp.eq.s32.totalorder %s19, 0
      %p124 = por %p122, %p123
      %p125 = scmp.ne.s32.totalorder %s113, %s114
      %p126 = scmp.eq.s32.totalorder %s20, 1
      %p127 = por %p125, %p126
      %p129 = scmp.ne.s32.totalorder %s114, %s128
      %p130 = scmp.eq.s32.totalorder %s20, 0
      %p131 = por %p129, %p130
      %s132 = ssub.s32 %s14, %s21
      %p133 = scmp.eq.s32.totalorder %s132, 0
      %s135 = sadd.s32 %s134, 1
      %s136 = scalar_select %p133, %s134, %s135
      %p139 = pneg %p133
      %p140 = scmp.eq.s32.totalorder %s14, 1
      %p141 = por %p139, %p140
      %p142 = scmp.ne.s32.totalorder %s134, %s137
      %p143 = scmp.eq.s32.totalorder %s14, 0
      %p144 = por %p142, %p143
      %p145 = scmp.ne.s32.totalorder %s134, %s137
      %p146 = scmp.eq.s32.totalorder %s19, 1
      %p147 = por %p145, %p146
      %p148 = scmp.ne.s32.totalorder %s137, %s138
      %p149 = scmp.eq.s32.totalorder %s19, 0
      %p150 = por %p148, %p149
      %p151 = scmp.ne.s32.totalorder %s137, %s138
      %p152 = scmp.eq.s32.totalorder %s20, 1
      %p153 = por %p151, %p152
      %p155 = scmp.ne.s32.totalorder %s138, %s154
      %p156 = scmp.eq.s32.totalorder %s20, 0
      %p157 = por %p155, %p156
      %p158 = scmp.le.s32.totalorder 1, %s14
      %p159 = scmp.lt.s32.totalorder %s14, 3
      %p160 = pnand %p158, %p159
      %p161 = pneg %p160
      // Predicated region
      $region9: #{tpu_custom_call.1} parent=5 // pred_check
        _
      $region10: #{tpu_custom_call.1} parent=5 // pred_check_branch
        %163 = sbr.rel (%p160) target = $region12
      $region11: #{tpu_custom_call.1} parent=5 // pred_region
        %s164 = ssub.s32 %s14, 1
        // Predicated region
        $region13: #{tpu_custom_call.1} parent=11 // pred_check
          %p165 = pneg %p61
        $region14: #{tpu_custom_call.1} parent=11 // pred_check_branch
          %167 = sbr.rel (%p165) target = $region16
        $region15: #{tpu_custom_call.1} parent=11 // pred_region
          _
        $region16: #{tpu_custom_call.1} parent=11 // pred_fallthru
          _
        // Predicated region
        $region17: #{tpu_custom_call.1} parent=11 // pred_check
          %p168 = pneg %p82
        $region18: #{tpu_custom_call.1} parent=11 // pred_check_branch
          %170 = sbr.rel (%p168) target = $region20
        $region19: #{tpu_custom_call.1} parent=11 // pred_region
          _
        $region20: #{tpu_custom_call.1} parent=11 // pred_fallthru
          _
        // Predicated region
        $region21: #{tpu_custom_call.1} parent=11 // pred_check
          %p171 = pneg %p103
        $region22: #{tpu_custom_call.1} parent=11 // pred_check_branch
          %173 = sbr.rel (%p171) target = $region24
        $region23: #{tpu_custom_call.1} parent=11 // pred_region
          _
        $region24: #{tpu_custom_call.1} parent=11 // pred_fallthru
          _
        // Predicated region
        $region25: #{tpu_custom_call.1} parent=11 // pred_check
          %p174 = pneg %p124
        $region26: #{tpu_custom_call.1} parent=11 // pred_check_branch
          %176 = sbr.rel (%p174) target = $region28
        $region27: #{tpu_custom_call.1} parent=11 // pred_region
          _
        $region28: #{tpu_custom_call.1} parent=11 // pred_fallthru
          _
      $region12: #{tpu_custom_call.1} parent=5 // pred_fallthru
        _
      %p177 = scmp.lt.s32.totalorder %s14, 2
      // Predicated region
      $region29: #{tpu_custom_call.1} parent=5 // pred_check
        %p178 = pneg %p177
      $region30: #{tpu_custom_call.1} parent=5 // pred_check_branch
        %180 = sbr.rel (%p178) target = $region32
      $region31: #{tpu_custom_call.1} parent=5 // pred_region
        // Predicated region
        $region33: #{tpu_custom_call.1} parent=31 // pred_check
          %p181 = pneg %p34
        $region34: #{tpu_custom_call.1} parent=31 // pred_check_branch
          %183 = sbr.rel (%p181) target = $region36
        $region35: #{tpu_custom_call.1} parent=31 // pred_region
          %p184 = scmp.lt.s32.totalorder %s14, 1
          %s185 = scalar_select %p184, %s14, 1
          %s186 = smul.addr %s185, 8
          %s187 = scalar_lea.vmem %s0, %s186
        $region36: #{tpu_custom_call.1} parent=31 // pred_fallthru
          _
      $region32: #{tpu_custom_call.1} parent=5 // pred_fallthru
        _
      %p188 = scmp.le.s32.totalorder 1, %s14
      %p189 = scmp.lt.s32.totalorder %s14, 3
      %p190 = pnand %p188, %p189
      %p191 = pneg %p190
      // Predicated region
      $region37: #{tpu_custom_call.1} parent=5 // pred_check
        _
      $region38: #{tpu_custom_call.1} parent=5 // pred_check_branch
        %193 = sbr.rel (%p190) target = $region40
      $region39: #{tpu_custom_call.1} parent=5 // pred_region
        %s194 = ssub.s32 %s14, 1
        %p195 = scmp.lt.s32.totalorder %s19, 1
        %s196 = scalar_select %p195, %s19, 1
        %s197 = smul.addr %s196, 8
        %s198 = scalar_lea.vmem %s0, %s197
        %p199 = pneg %p40
        %p200 = pneg %p37
        %p201 = pneg %p61
        %p202 = pneg %p58
        %p203 = pneg %p82
        %p204 = pneg %p79
        %p205 = pneg %p103
        %p206 = pneg %p100
        %p207 = pneg %p124
        %p208 = pneg %p121
        %p209 = pneg %p150
        %p210 = pneg %p147
        %s211 = sand.u32 %s137, 1
        %s212 = scalar_lea.sflag [#allocation3], %s211
        %s213 = sand.u32 %s137, 1
        %s214 = smul.addr %s213, 8
        %s215 = scalar_lea.vmem [#allocation2], %s214
        %p216 = scmp.lt.s32.totalorder %s19, 1
        %s217 = scalar_select %p216, %s19, 1
        %s218 = smul.addr %s217, 8
        %s219 = scalar_lea.vmem %s0, %s218
        %v221 = vld [vmem:[%s219] sm:$0xff]
        %v222 = vpack.c.bf16 %v221, %v221
        %v223 = vld [vmem:[%s1] sm:$0xf]
        %v224 = vld [vmem:[%s1 + $0x4] sm:$0xf]
        %v225 = vld [vmem:[%s1 + $0x8] sm:$0xf]
        %v226 = vld [vmem:[%s1 + $0xc] sm:$0xf]
        %v227 = vld [vmem:[%s1 + $0x10] sm:$0xf]
        %v228 = vld [vmem:[%s1 + $0x14] sm:$0xf]
        %v229 = vld [vmem:[%s1 + $0x18] sm:$0xf]
        %v230 = vld [vmem:[%s1 + $0x1c] sm:$0xf]
        %v231 = vld [vmem:[%s2] sm:$0x1]
        %v233 = vperm.slane %v231, 0
        %v243 = vunpack.c.l.b16 %v223
        %v244 = vunpack.c.l.b16 %v224
        %v245 = vunpack.c.l.b16 %v225
        %v246 = vunpack.c.l.b16 %v226
        %v247 = vunpack.c.l.b16 %v227
        %v248 = vunpack.c.l.b16 %v228
        %v249 = vunpack.c.l.b16 %v229
        %v250 = vunpack.c.l.b16 %v230
        %v251 = vpack.c.b16 %v244, %v243
        %v252 = vpack.c.b16 %v246, %v245
        %v253 = vpack.c.b16 %v248, %v247
        %v254 = vpack.c.b16 %v250, %v249
        %vm259 = vcmask 523264
        %v261 = vsel %vm259, %v222, 0
        %263 = vmatpush.bf16.msra.mxu0 0
        %264 = vmatpush.bf16.msra.mxu0 0
        %265 = vmatpush.bf16.msra.mxu0 0
        %266 = vmatpush.bf16.msra.mxu0 0
        %267 = vmatpush.bf16.msra.mxu0 %v254
        %268 = vmatpush.bf16.msra.mxu0 %v253
        %269 = vmatpush.bf16.msra.mxu0 %v252
        %270 = vmatpush.bf16.msra.mxu0 %v251
        %271 = vmatmul.bf16.gmra.mxu0 %v261
        %v272 = vpop.f32.mrf.mxu0
        %v273 = vadd.f32 %v233, %v272
        %v274 = vpop.f32.mrf.mxu0
        %275 = vdwg.mxu0
        %v276 = vmul.f32 %v273, 0.5
        %v277 = vmul.f32 %v273, 0.70710677
        %vm278 = vcmp.ge.f32.partialorder %v277, 0.0
        %v279 = vsel %vm278, 1.0, -1.0
        %v280 = vand.u32 2147483647, %v277
        %v281 = vmul.f32 %v280, 0.3275911
        %v282 = vadd.f32 %v281, 1.0
        %v283 = vrcp.pop %v282
        %v284 = vmul.f32 %v283, 1.0614054
        %v285 = vadd.f32 %v284, -1.4531521
        %v286 = vmul.f32 %v285, %v283
        %v287 = vadd.f32 %v286, 1.4214138
        %v288 = vmul.f32 %v287, %v283
        %v289 = vadd.f32 %v288, -0.28449672
        %v290 = vmul.f32 %v289, %v283
        %v291 = vadd.f32 %v290, 0.2548296
        %v292 = vmul.f32 %v291, %v283
        %v293 = vsub.f32 0.0, %v280
        %v294 = vmul.f32 %v293, %v280
        %v295 = vmul.f32 %v294, 1.442695
        %v296 = vpow.pop %v295
        %v297 = vmul.f32 %v292, %v296
        %v298 = vsub.f32 1.0, %v297
        %v299 = vmul.f32 %v279, %v298
        %v300 = vadd.f32 %v299, 1.0
        %v301 = vmul.f32 %v276, %v300
        %v302 = vpack.c.bf16 %v301, %v301
        %v303 = vld [vmem:[%s3] sm:$0xf]
        %v304 = vld [vmem:[%s3 + $0x4] sm:$0xf]
        %v305 = vld [vmem:[%s4] sm:$0x1]
        %v307 = vperm.slane %v305, 0
        %v311 = vunpack.c.l.b16 %v303
        %v312 = vunpack.c.l.b16 %v304
        %v313 = vpack.c.b16 %v312, %v311
        %vm315 = vcmask 130048
        %v317 = vsel %vm315, %v302, 0
        %319 = vmatpush.bf16.msra.mxu0 0
        %320 = vmatpush.bf16.msra.mxu0 0
        %321 = vmatpush.bf16.msra.mxu0 0
        %322 = vmatpush.bf16.msra.mxu0 0
        %323 = vmatpush.bf16.msra.mxu0 0
        %324 = vmatpush.bf16.msra.mxu0 0
        %325 = vmatpush.bf16.msra.mxu0 0
        %326 = vmatpush.bf16.msra.mxu0 %v313
        %327 = vmatmul.bf16.gmra.mxu0 %v317
        %v328 = vpop.f32.mrf.mxu0
        %v329 = vadd.f32 %v307, %v328
        %v330 = vpop.f32.mrf.mxu0
        %331 = vdwg.mxu0
        %332 = vst [vmem:[%s215] sm:$0xff] %v329
        %s333 = sand.u32 %s137, 1
        %s334 = scalar_lea.sflag [#allocation3], %s333
        %s335 = sand.u32 %s137, 1
        %s336 = smul.addr %s335, 8
        %s337 = scalar_lea.vmem [#allocation2], %s336
        // Predicated region
        $region41: #{tpu_custom_call.1} parent=39 // pred_check
          %p338 = pneg %p147
        $region42: #{tpu_custom_call.1} parent=39 // pred_check_branch
          %340 = sbr.rel (%p338) target = $region44
        $region43: #{tpu_custom_call.1} parent=39 // pred_region
          %342 = vsyncadd %s334, 0
          %s343 = smul.addr %s19, 8
          %s344 = scalar_lea.hbm %s5, %s343
          %s346 = sshll.u32 %s337, 4
          %s347 = int_to_ptr.vmem [resolvable:$true] %s346
          %s348 = sshll.u32 %s344, 4
          %s349 = int_to_ptr.hbm [resolvable:$true] %s348
          %351 = dma.vmem_to_hbm [thread:$0]  %s347, 128, %s349, %s334
        $region44: #{tpu_custom_call.1} parent=39 // pred_fallthru
          _
      $region40: #{tpu_custom_call.1} parent=5 // pred_fallthru
        _
      %p352 = scmp.le.s32.totalorder 2, %s14
      // Predicated region
      $region45: #{tpu_custom_call.1} parent=5 // pred_check
        %p353 = pneg %p352
      $region46: #{tpu_custom_call.1} parent=5 // pred_check_branch
        %355 = sbr.rel (%p353) target = $region48
      $region47: #{tpu_custom_call.1} parent=5 // pred_region
        %s356 = ssub.s32 %s14, 2
        // Predicated region
        $region49: #{tpu_custom_call.1} parent=47 // pred_check
          %p357 = pneg %p153
        $region50: #{tpu_custom_call.1} parent=47 // pred_check_branch
          %359 = sbr.rel (%p357) target = $region52
        $region51: #{tpu_custom_call.1} parent=47 // pred_region
          %s360 = sand.u32 %s138, 1
          %s361 = scalar_lea.sflag [#allocation3], %s360
          %s362 = sand.u32 %s138, 1
          %s363 = smul.addr %s362, 8
          %s364 = scalar_lea.vmem [#allocation2], %s363
          %366 = dma.done %s361, 128
        $region52: #{tpu_custom_call.1} parent=47 // pred_fallthru
          _
      $region48: #{tpu_custom_call.1} parent=5 // pred_fallthru
        _
    $region6: #{tpu_custom_call.1} parent=1 // loop_footer
      %s18 = sadd.s32 1, %s14
    $region7: #{tpu_custom_call.1} parent=1 // loop_footer_branch
      %13 = sbr.rel target = $region3
    $region8: #{tpu_custom_call.1} parent=1 // loop_exit
      _
    %367 = vsyncpa [#allocation3], 1
    %s368 = scalar_lea.sflag [#allocation3], 1
    %369 = vsyncpa %s368, 1

</llo_original>
